<compile_context>
chip_gen: v7x
topology: tpu7x:2x2x1
jax: 0.10.0
libtpu: 0.0.40
codegen_flags: <defaults>
</compile_context>

<pallas_src>
import jax
import jax.numpy as jnp
from jax.experimental import pallas as pl
from jax.experimental.pallas import tpu as pltpu


def _round_up(v, m):
    return (v + m - 1) // m * m


def _upsample2x_conv3_kernel(x_ref, h_ref, w_ref, b_ref, o_ref):
    # x_ref: (Cin, TL)     input tile (original, NOT upsampled)
    # h_ref: (Cin, 2)      halo cols [x[tile_start-1], x[tile_end]] (zeros at true ends)
    # w_ref: (4*Cp, Cin)   folded weights, row blocks = [w0 ; w1+w2 ; w0+w1 ; w2]
    # b_ref: (Cp, 1)       bias column (f32), rows padded with zeros
    # o_ref: (Cout, 2*TL)  output tile
    cp = w_ref.shape[0] // 4
    cout = o_ref.shape[0]
    tl = x_ref.shape[1]
    f32 = jnp.float32

    x = x_ref[...]
    # One MXU dot (K = Cin) produces all four partial products.
    p = jnp.dot(w_ref[...], x, preferred_element_type=f32)        # (4*Cp, TL) f32
    a = p[0 * cp:1 * cp]      # w0      @ x
    b = p[1 * cp:2 * cp]      # (w1+w2) @ x
    c = p[2 * cp:3 * cp]      # (w0+w1) @ x
    d = p[3 * cp:4 * cp]      # w2      @ x

    # Polyphase recombination:
    #   out[:, 2t]   = a[:, t-1] + b[:, t]     (a[:, -1]  comes from the left halo)
    #   out[:, 2t+1] = c[:, t]   + d[:, t+1]   (d[:, TL]  comes from the right halo)
    # Shift + lane interleave via fixed-size 0/1 scatter matrices on the MXU
    # (exact in f32: exactly one nonzero per output column per scatter).
    t = jax.lax.broadcasted_iota(jnp.int32, (tl, 2 * tl), 0)
    j = jax.lax.broadcasted_iota(jnp.int32, (tl, 2 * tl), 1)
    scat_a = (j == 2 * t + 2).astype(f32)
    scat_b = (j == 2 * t).astype(f32)
    scat_c = (j == 2 * t + 1).astype(f32)
    scat_d = (j == 2 * t - 1).astype(f32)

    out = (jnp.dot(a, scat_a, preferred_element_type=f32)
           + jnp.dot(b, scat_b, preferred_element_type=f32)
           + jnp.dot(c, scat_c, preferred_element_type=f32)
           + jnp.dot(d, scat_d, preferred_element_type=f32))       # (Cp, 2*TL)

    # Exact 1-column cross-tile terms at the two seams.
    hh = jnp.dot(w_ref[...], h_ref[...], preferred_element_type=f32)  # (4*Cp, 2)
    hl = hh[0 * cp:1 * cp, 0:1]       # w0 @ x[tile_start - 1]  -> out[:, 0]
    hr = hh[3 * cp:4 * cp, 1:2]       # w2 @ x[tile_end]        -> out[:, 2*TL - 1]
    jo = jax.lax.broadcasted_iota(jnp.int32, (cp, 2 * tl), 1)
    out = out + jnp.where(jo == 0, hl, 0.0) + jnp.where(jo == 2 * tl - 1, hr, 0.0)

    out = out + b_ref[...]
    o_ref[...] = out[:cout, :].astype(o_ref.dtype)


def upsample_forward(x, weight, bias, scale_factor=2, compute_dtype=None, tile_l=128):
    """UpSample.forward: x (N, Cin, L) -> (N, Cin//2, L*scale_factor)."""
    N, Cin, L = x.shape
    Cout = weight.shape[0]

    if scale_factor != 2:
        # TODO(synk): polyphase kernel is specialized for x2 nearest upsample;
        # other scale factors take the plain XLA path.
        return _reference_forward(x, weight, bias, scale_factor)

    cdt = compute_dtype or x.dtype     # pass jnp.bfloat16 to halve HBM read traffic
    TL = min(int(tile_l), L)
    L_pad = _round_up(L, TL)
    nL = L_pad // TL
    cp = _round_up(Cout, 8)            # phase split on an 8-sublane boundary (f32 acc)

    x_in = x
    if L_pad != L:
        x_in = jnp.pad(x_in, ((0, 0), (0, 0), (0, L_pad - L)))
    x_in = x_in.astype(cdt)

    # Per-tile halo columns (2 columns per tile, negligible HBM traffic), so
    # each grid step reads only its own (Cin, TL) tile.
    zcol = jnp.zeros((N, Cin, 1), cdt)
    if nL > 1:
        xl = jnp.concatenate([zcol, x_in[:, :, TL - 1:L_pad - 1:TL]], axis=-1)  # (N,Cin,nL)
        xr = jnp.concatenate([x_in[:, :, TL::TL], zcol], axis=-1)               # (N,Cin,nL)
    else:
        xl, xr = zcol, zcol
    halos = jnp.stack([xl, xr], axis=-1).transpose(0, 2, 1, 3)    # (N, nL, Cin, 2)

    # Polyphase weight fold (tiny, wrapper-side).
    w0, w1, w2 = weight[:, :, 0], weight[:, :, 1], weight[:, :, 2]
    padrows = lambda m: jnp.pad(m, ((0, cp - Cout), (0, 0)))
    w_stack = jnp.concatenate(
        [padrows(w0), padrows(w1 + w2), padrows(w0 + w1), padrows(w2)],
        axis=0).astype(cdt)                                        # (4*cp, Cin)
    b_col = jnp.pad(bias, (0, cp - Cout)).reshape(cp, 1).astype(jnp.float32)

    in_bytes = jnp.dtype(cdt).itemsize
    out_bytes = jnp.dtype(x.dtype).itemsize
    cost = pl.CostEstimate(
        flops=int(2 * N * L_pad * (4 * cp * Cin + 8 * cp * TL)),
        transcendentals=0,
        bytes_accessed=int(N * L_pad * (Cin * in_bytes + 2 * Cout * out_bytes)
                           + 4 * cp * Cin * in_bytes),
    )

    out = pl.pallas_call(
        _upsample2x_conv3_kernel,
        out_shape=jax.ShapeDtypeStruct((N, Cout, 2 * L_pad), x.dtype),
        grid=(N, nL),
        in_specs=[
            pl.BlockSpec((None, Cin, TL), lambda n, i: (n, 0, i)),
            pl.BlockSpec((None, None, Cin, 2), lambda n, i: (n, i, 0, 0)),
            pl.BlockSpec((4 * cp, Cin), lambda n, i: (0, 0)),
            pl.BlockSpec((cp, 1), lambda n, i: (0, 0)),
        ],
        out_specs=pl.BlockSpec((None, Cout, 2 * TL), lambda n, i: (n, 0, i)),
        compiler_params=pltpu.CompilerParams(
            # No reduction axis: both grid axes are independent, so v7x's two
            # TensorCores stay busy even when N == 1 (the L axis parallelizes).
            dimension_semantics=("parallel", "parallel"),
            vmem_limit_bytes=32 * 1024 * 1024,
        ),
        cost_estimate=cost,
    )(x_in, halos, w_stack, b_col)

    if L_pad != L:
        out = out[:, :, :2 * L]
    return out


def _reference_forward(x, weight, bias, scale_factor=2):
    """Pure-JAX reference mirroring the PyTorch module exactly."""
    x_up = jnp.repeat(x, scale_factor, axis=-1)
    out = jax.lax.conv_general_dilated(
        x_up, weight, window_strides=(1,), padding=((1, 1),),
        dimension_numbers=("NCH", "OIH", "NCH"))
    return out + bias.reshape(1, -1, 1)


if __name__ == "__main__":
    key = jax.random.PRNGKey(0)
    kx, kw, kb = jax.random.split(key, 3)

    # Shapes consistent with the module: UpSample(inChannels=8) on (batch=2, 8, 16).
    N, Cin, L = 2, 8, 16
    Cout = Cin // 2

    x = jax.random.normal(kx, (N, Cin, L), dtype=jnp.float32)
    weight = jax.random.normal(kw, (Cout, Cin, 3), dtype=jnp.float32) * 0.1
    bias = jax.random.normal(kb, (Cout,), dtype=jnp.float32) * 0.1

    out = upsample_forward(x, weight, bias)
    jax.block_until_ready(out)
    ref = _reference_forward(x, weight, bias)
    assert out.shape == (N, Cout, 2 * L), out.shape
    assert jnp.allclose(out, ref, atol=1e-4, rtol=1e-4), "f32 mismatch vs reference"

    # bf16 compute path (halves HBM read traffic); f32 accumulation, loose tolerance.
    out_bf = upsample_forward(x, weight, bias, compute_dtype=jnp.bfloat16)
    jax.block_until_ready(out_bf)
    assert float(jnp.max(jnp.abs(out_bf - ref))) < 0.15, "bf16 path mismatch"

    # Multi-tile path: exercises L tiling, halo columns, L padding, and N=1.
    N2, Cin2, L2 = 1, 16, 320
    Cout2 = Cin2 // 2
    x2 = jax.random.normal(kx, (N2, Cin2, L2), dtype=jnp.float32)
    w2 = jax.random.normal(kw, (Cout2, Cin2, 3), dtype=jnp.float32) * 0.1
    b2 = jax.random.normal(kb, (Cout2,), dtype=jnp.float32) * 0.1
    out2 = upsample_forward(x2, w2, b2)
    jax.block_until_ready(out2)
    ref2 = _reference_forward(x2, w2, b2)
    assert out2.shape == (N2, Cout2, 2 * L2), out2.shape
    assert jnp.allclose(out2, ref2, atol=1e-4, rtol=1e-4), "tiled mismatch vs reference"

    print("KERNEL_OK")
</pallas_src>

<mosaic_0001>
module attributes {stable_mosaic.version = 11 : i64} {
  func.func @_upsample2x_conv3_kernel(%arg0: i32, %arg1: i32, %arg2: memref<1x8x16xf32, #tpu.memory_space<vmem>>, %arg3: memref<1x1x8x2xf32, #tpu.memory_space<vmem>>, %arg4: memref<32x8xf32, #tpu.memory_space<vmem>>, %arg5: memref<8x1xf32, #tpu.memory_space<vmem>>, %arg6: memref<1x4x32xf32, #tpu.memory_space<vmem>>) attributes {dimension_semantics = [#tpu.dimension_semantics<parallel>, #tpu.dimension_semantics<parallel>], iteration_bounds = array<i64: 2, 1>, scalar_prefetch = 0 : i64, scratch_operands = 0 : i64, tpu.core_type = #tpu.core_type<tc>, window_params = [{transform_indices = @transform_0, window_bounds = array<i64: 1, 8, 16>}, {transform_indices = @transform_1, window_bounds = array<i64: 1, 1, 8, 2>}, {pipeline_mode = #tpu.pipeline_mode<synchronous>, transform_indices = @transform_2, window_bounds = array<i64: 32, 8>}, {pipeline_mode = #tpu.pipeline_mode<synchronous>, transform_indices = @transform_3, window_bounds = array<i64: 8, 1>}, {transform_indices = @transform_4, window_bounds = array<i64: 1, 4, 32>}]} {
    %c0 = arith.constant 0 : index
    %c0_0 = arith.constant 0 : index
    %c0_1 = arith.constant 0 : index
    %0 = vector.load %arg2[%c0, %c0_0, %c0_1] : memref<1x8x16xf32, #tpu.memory_space<vmem>>, vector<1x8x16xf32>
    %1 = vector.shape_cast %0 : vector<1x8x16xf32> to vector<8x16xf32>
    %c0_2 = arith.constant 0 : index
    %c0_3 = arith.constant 0 : index
    %2 = vector.load %arg4[%c0_2, %c0_3] : memref<32x8xf32, #tpu.memory_space<vmem>>, vector<32x8xf32>
    %cst = arith.constant dense<0.000000e+00> : vector<32x16xf32>
    %3 = tpu.matmul %2, %1, %cst {dimension_numbers = #tpu.dot_dimension_numbers<[1], [0], [0], [1], [0, 0, 1, 1], [], []>} : vector<32x8xf32>, vector<8x16xf32>, vector<32x16xf32> -> vector<32x16xf32>
    %4 = vector.extract_strided_slice %3 {offsets = [0, 0], sizes = [8, 16], strides = [1, 1]} : vector<32x16xf32> to vector<8x16xf32>
    %5 = vector.extract_strided_slice %3 {offsets = [8, 0], sizes = [8, 16], strides = [1, 1]} : vector<32x16xf32> to vector<8x16xf32>
    %6 = vector.extract_strided_slice %3 {offsets = [16, 0], sizes = [8, 16], strides = [1, 1]} : vector<32x16xf32> to vector<8x16xf32>
    %7 = vector.extract_strided_slice %3 {offsets = [24, 0], sizes = [8, 16], strides = [1, 1]} : vector<32x16xf32> to vector<8x16xf32>
    %8 = tpu.iota {dimensions = array<i32: 0>} : vector<16x32xi32>
    %9 = tpu.iota {dimensions = array<i32: 1>} : vector<16x32xi32>
    %c2_i32 = arith.constant 2 : i32
    %10 = vector.broadcast %c2_i32 : i32 to vector<16x32xi32>
    %11 = arith.muli %10, %8 : vector<16x32xi32>
    %c2_i32_4 = arith.constant 2 : i32
    %12 = vector.broadcast %c2_i32_4 : i32 to vector<16x32xi32>
    %13 = arith.addi %11, %12 : vector<16x32xi32>
    %14 = arith.cmpi eq, %9, %13 : vector<16x32xi32>
    %15 = arith.extui %14 : vector<16x32xi1> to vector<16x32xi32>
    %16 = arith.sitofp %15 : vector<16x32xi32> to vector<16x32xf32>
    %c2_i32_5 = arith.constant 2 : i32
    %17 = vector.broadcast %c2_i32_5 : i32 to vector<16x32xi32>
    %18 = arith.muli %17, %8 : vector<16x32xi32>
    %19 = arith.cmpi eq, %9, %18 : vector<16x32xi32>
    %20 = arith.extui %19 : vector<16x32xi1> to vector<16x32xi32>
    %21 = arith.sitofp %20 : vector<16x32xi32> to vector<16x32xf32>
    %c2_i32_6 = arith.constant 2 : i32
    %22 = vector.broadcast %c2_i32_6 : i32 to vector<16x32xi32>
    %23 = arith.muli %22, %8 : vector<16x32xi32>
    %c1_i32 = arith.constant 1 : i32
    %24 = vector.broadcast %c1_i32 : i32 to vector<16x32xi32>
    %25 = arith.addi %23, %24 : vector<16x32xi32>
    %26 = arith.cmpi eq, %9, %25 : vector<16x32xi32>
    %27 = arith.extui %26 : vector<16x32xi1> to vector<16x32xi32>
    %28 = arith.sitofp %27 : vector<16x32xi32> to vector<16x32xf32>
    %c2_i32_7 = arith.constant 2 : i32
    %29 = vector.broadcast %c2_i32_7 : i32 to vector<16x32xi32>
    %30 = arith.muli %29, %8 : vector<16x32xi32>
    %c1_i32_8 = arith.constant 1 : i32
    %31 = vector.broadcast %c1_i32_8 : i32 to vector<16x32xi32>
    %32 = arith.subi %30, %31 : vector<16x32xi32>
    %33 = arith.cmpi eq, %9, %32 : vector<16x32xi32>
    %34 = arith.extui %33 : vector<16x32xi1> to vector<16x32xi32>
    %35 = arith.sitofp %34 : vector<16x32xi32> to vector<16x32xf32>
    %cst_9 = arith.constant dense<0.000000e+00> : vector<8x32xf32>
    %36 = tpu.matmul %4, %16, %cst_9 {dimension_numbers = #tpu.dot_dimension_numbers<[1], [0], [0], [1], [0, 0, 1, 1], [], []>} : vector<8x16xf32>, vector<16x32xf32>, vector<8x32xf32> -> vector<8x32xf32>
    %cst_10 = arith.constant dense<0.000000e+00> : vector<8x32xf32>
    %37 = tpu.matmul %5, %21, %cst_10 {dimension_numbers = #tpu.dot_dimension_numbers<[1], [0], [0], [1], [0, 0, 1, 1], [], []>} : vector<8x16xf32>, vector<16x32xf32>, vector<8x32xf32> -> vector<8x32xf32>
    %38 = arith.addf %36, %37 : vector<8x32xf32>
    %cst_11 = arith.constant dense<0.000000e+00> : vector<8x32xf32>
    %39 = tpu.matmul %6, %28, %cst_11 {dimension_numbers = #tpu.dot_dimension_numbers<[1], [0], [0], [1], [0, 0, 1, 1], [], []>} : vector<8x16xf32>, vector<16x32xf32>, vector<8x32xf32> -> vector<8x32xf32>
    %40 = arith.addf %38, %39 : vector<8x32xf32>
    %cst_12 = arith.constant dense<0.000000e+00> : vector<8x32xf32>
    %41 = tpu.matmul %7, %35, %cst_12 {dimension_numbers = #tpu.dot_dimension_numbers<[1], [0], [0], [1], [0, 0, 1, 1], [], []>} : vector<8x16xf32>, vector<16x32xf32>, vector<8x32xf32> -> vector<8x32xf32>
    %42 = arith.addf %40, %41 : vector<8x32xf32>
    %c0_13 = arith.constant 0 : index
    %c0_14 = arith.constant 0 : index
    %43 = vector.load %arg4[%c0_13, %c0_14] : memref<32x8xf32, #tpu.memory_space<vmem>>, vector<32x8xf32>
    %c0_15 = arith.constant 0 : index
    %c0_16 = arith.constant 0 : index
    %c0_17 = arith.constant 0 : index
    %c0_18 = arith.constant 0 : index
    %44 = vector.load %arg3[%c0_15, %c0_16, %c0_17, %c0_18] : memref<1x1x8x2xf32, #tpu.memory_space<vmem>>, vector<1x1x8x2xf32>
    %45 = vector.shape_cast %44 : vector<1x1x8x2xf32> to vector<8x2xf32>
    %cst_19 = arith.constant dense<0.000000e+00> : vector<32x2xf32>
    %46 = tpu.matmul %43, %45, %cst_19 {dimension_numbers = #tpu.dot_dimension_numbers<[1], [0], [0], [1], [0, 0, 1, 1], [], []>} : vector<32x8xf32>, vector<8x2xf32>, vector<32x2xf32> -> vector<32x2xf32>
    %47 = vector.extract_strided_slice %46 {offsets = [0, 0], sizes = [8, 1], strides = [1, 1]} : vector<32x2xf32> to vector<8x1xf32>
    %48 = vector.extract_strided_slice %46 {offsets = [24, 1], sizes = [8, 1], strides = [1, 1]} : vector<32x2xf32> to vector<8x1xf32>
    %49 = tpu.iota {dimensions = array<i32: 1>} : vector<8x32xi32>
    %c0_i32 = arith.constant 0 : i32
    %50 = vector.broadcast %c0_i32 : i32 to vector<8x32xi32>
    %51 = arith.cmpi eq, %49, %50 : vector<8x32xi32>
    %cst_20 = arith.constant 0.000000e+00 : f32
    %52 = vector.shape_cast %47 : vector<8x1xf32> to vector<8x1xf32>
    %53 = vector.broadcast %52 : vector<8x1xf32> to vector<8x32xf32>
    %54 = vector.broadcast %cst_20 : f32 to vector<8x32xf32>
    %55 = arith.select %51, %53, %54 : vector<8x32xi1>, vector<8x32xf32>
    %56 = arith.addf %42, %55 : vector<8x32xf32>
    %c31_i32 = arith.constant 31 : i32
    %57 = vector.broadcast %c31_i32 : i32 to vector<8x32xi32>
    %58 = arith.cmpi eq, %49, %57 : vector<8x32xi32>
    %cst_21 = arith.constant 0.000000e+00 : f32
    %59 = vector.shape_cast %48 : vector<8x1xf32> to vector<8x1xf32>
    %60 = vector.broadcast %59 : vector<8x1xf32> to vector<8x32xf32>
    %61 = vector.broadcast %cst_21 : f32 to vector<8x32xf32>
    %62 = arith.select %58, %60, %61 : vector<8x32xi1>, vector<8x32xf32>
    %63 = arith.addf %56, %62 : vector<8x32xf32>
    %c0_22 = arith.constant 0 : index
    %c0_23 = arith.constant 0 : index
    %64 = vector.load %arg5[%c0_22, %c0_23] : memref<8x1xf32, #tpu.memory_space<vmem>>, vector<8x1xf32>
    %65 = vector.broadcast %64 : vector<8x1xf32> to vector<8x32xf32>
    %66 = arith.addf %63, %65 : vector<8x32xf32>
    %67 = vector.extract_strided_slice %66 {offsets = [0, 0], sizes = [4, 32], strides = [1, 1]} : vector<8x32xf32> to vector<4x32xf32>
    %c0_24 = arith.constant 0 : index
    %c0_25 = arith.constant 0 : index
    %c0_26 = arith.constant 0 : index
    %68 = vector.load %arg6[%c0_24, %c0_25, %c0_26] : memref<1x4x32xf32, #tpu.memory_space<vmem>>, vector<1x4x32xf32>
    %69 = vector.shape_cast %68 : vector<1x4x32xf32> to vector<4x32xf32>
    %70 = vector.shape_cast %67 : vector<4x32xf32> to vector<1x4x32xf32>
    tpu.vector_store %arg6[%c0_24, %c0_25, %c0_26], %70 {strides = array<i32>} : memref<1x4x32xf32, #tpu.memory_space<vmem>>, vector<1x4x32xf32>,
    return
  }
  func.func @transform_0(%arg0: i32, %arg1: i32) -> (i32, i32, i32) {
    %c0_i32 = arith.constant 0 : i32
    %c0_i32_0 = arith.constant 0 : i32
    return %arg0, %c0_i32, %arg1 : i32, i32, i32
  }
  func.func @transform_1(%arg0: i32, %arg1: i32) -> (i32, i32, i32, i32) {
    %c0_i32 = arith.constant 0 : i32
    %c0_i32_0 = arith.constant 0 : i32
    %c0_i32_1 = arith.constant 0 : i32
    return %arg0, %arg1, %c0_i32, %c0_i32_0 : i32, i32, i32, i32
  }
  func.func @transform_2(%arg0: i32, %arg1: i32) -> (i32, i32) {
    %c0_i32 = arith.constant 0 : i32
    %c0_i32_0 = arith.constant 0 : i32
    %c0_i32_1 = arith.constant 0 : i32
    return %c0_i32, %c0_i32_0 : i32, i32
  }
  func.func @transform_3(%arg0: i32, %arg1: i32) -> (i32, i32) {
    %c0_i32 = arith.constant 0 : i32
    %c0_i32_0 = arith.constant 0 : i32
    %c0_i32_1 = arith.constant 0 : i32
    return %c0_i32, %c0_i32_0 : i32, i32
  }
  func.func @transform_4(%arg0: i32, %arg1: i32) -> (i32, i32, i32) {
    %c0_i32 = arith.constant 0 : i32
    %c0_i32_0 = arith.constant 0 : i32
    return %arg0, %c0_i32, %arg1 : i32, i32, i32
  }
}

</mosaic_0001>

<llo_original>
// kernel: tpu_custom_call.1
$region0: #{tpu_custom_call.1}
  #allocation0 [shape = 'u32[]', space=smem, size = 0x4, offset = 0x4, fixed_abs, tag = 'smem constant byte address 0x4 - core index']
  #allocation1 [shape = 'u32[144,128]{1,0:T(1,128)}', space=vmem, size = 0x12000, scoped, tag = 'internal scratch']
  %s0 = inlined_call_operand.vmem [shape: f32[2,8,16], index: 0, kind: input, shape index: {}]
  %s1 = inlined_call_operand.vmem [shape: f32[2,1,8,2], index: 1, kind: input, shape index: {}]
  %s2 = inlined_call_operand.vmem [shape: f32[32,8], index: 2, kind: input, shape index: {}]
  %s3 = inlined_call_operand.vmem [shape: f32[8,1], index: 3, kind: input, shape index: {}]
  %s4 = inlined_call_operand.hbm [shape: f32[2,4,32], index: 4, kind: output, shape index: {}]
  %s5 = sld [smem:[#allocation0]]
  $region49: #{tpu_custom_call.1} parent=0
    _
  %s7 = ssub.s32 1, %s5
  %s8 = scalar_select 0, %s7, %s5
  $region1: #{tpu_custom_call.1} parent=0
    #allocation2 [shape = 'u8[4096]{0}', space=vmem, size = 0x1000, scoped, tag = 'output window, operand 0']
    #allocation3 [shape = 's32[2]{0}', space=sflag, size = 0x8, scoped, tag = 'scoped memory for tpu_custom_call.1']
    %9 = vsyncpa [#allocation3], 0
    %s10 = scalar_lea.sflag [#allocation3], 1
    %11 = vsyncpa %s10, 0
    loop: start=0, step=1, limit=4
    $region2: #{tpu_custom_call.1} parent=1 // loop_pre_header
      _
    $region3: #{tpu_custom_call.1} parent=1 // loop_header
      %s13 = sphi 0, %s17
      %p14 = scmp.ge.s32.totalorder %s13, 4
      %s20 = sphi 0, %s32
      %s21 = sphi 0, %s28
      %s22 = sphi 0, %s20
      %s23 = sphi 0, %s21
      %s24 = sphi 0, %s22
      %s25 = sphi 0, %s23
      %s37 = sphi 0, %s39
      %s40 = sphi 0, %s37
      %s41 = sphi 0, %s40
      %s57 = sphi 0, %s41
      %s65 = sphi 0, %s67
      %s68 = sphi 0, %s65
      %s69 = sphi 0, %s68
      %s85 = sphi 0, %s69
      %s89 = sphi 0, %s89
      %s91 = sphi 0, %s89
      %s92 = sphi 0, %s91
      %s106 = sphi 0, %s92
      %s110 = sphi 0, %s110
      %s112 = sphi 0, %s110
      %s113 = sphi 0, %s112
      %s127 = sphi 0, %s113
      %s135 = sphi 0, %s137
      %s138 = sphi 0, %s135
      %s139 = sphi 0, %s138
      %s155 = sphi 0, %s139
    $region4: #{tpu_custom_call.1} parent=1 // loop_header_branch
      %16 = sbr.rel (%p14) target = $region8
    $region5: #{tpu_custom_call.1} parent=1 // loop_body
      %s18 = ssub.s32 %s13, 1
      %s19 = ssub.s32 %s13, 2
      %s26 = sadd.s32 1, %s21
      %p27 = scmp.ge.s32.totalorder %s26, 1
      %s28 = scalar_select %p27, 0, %s26
      %s29 = sadd.s32 1, %s20
      %s30 = scalar_select %p27, %s29, %s20
      %p31 = scmp.ge.s32.totalorder %s30, 2
      %s32 = scalar_select %p31, 0, %s30
      %s33 = ssub.s32 %s20, %s32
      %s34 = ssub.s32 %s21, %s28
      %s35 = sor.u32 %s33, %s34
      %p36 = scmp.eq.s32.totalorder %s35, 0
      %s38 = sadd.s32 %s37, 1
      %s39 = scalar_select %p36, %s37, %s38
      %p42 = pneg %p36
      %p43 = scmp.eq.s32.totalorder %s13, 1
      %p44 = por %p42, %p43
      %p45 = scmp.ne.s32.totalorder %s37, %s40
      %p46 = scmp.eq.s32.totalorder %s13, 0
      %p47 = por %p45, %p46
      %p48 = scmp.ne.s32.totalorder %s37, %s40
      %p49 = scmp.eq.s32.totalorder %s18, 1
      %p50 = por %p48, %p49
      %p51 = scmp.ne.s32.totalorder %s40, %s41
      %p52 = scmp.eq.s32.totalorder %s18, 0
      %p53 = por %p51, %p52
      %p54 = scmp.ne.s32.totalorder %s40, %s41
      %p55 = scmp.eq.s32.totalorder %s19, 1
      %p56 = por %p54, %p55
      %p58 = scmp.ne.s32.totalorder %s41, %s57
      %p59 = scmp.eq.s32.totalorder %s19, 0
      %p60 = por %p58, %p59
      %s61 = ssub.s32 %s20, %s32
      %s62 = ssub.s32 %s21, %s28
      %s63 = sor.u32 %s61, %s62
      %p64 = scmp.eq.s32.totalorder %s63, 0
      %s66 = sadd.s32 %s65, 1
      %s67 = scalar_select %p64, %s65, %s66
      %p70 = pneg %p64
      %p71 = scmp.eq.s32.totalorder %s13, 1
      %p72 = por %p70, %p71
      %p73 = scmp.ne.s32.totalorder %s65, %s68
      %p74 = scmp.eq.s32.totalorder %s13, 0
      %p75 = por %p73, %p74
      %p76 = scmp.ne.s32.totalorder %s65, %s68
      %p77 = scmp.eq.s32.totalorder %s18, 1
      %p78 = por %p76, %p77
      %p79 = scmp.ne.s32.totalorder %s68, %s69
      %p80 = scmp.eq.s32.totalorder %s18, 0
      %p81 = por %p79, %p80
      %p82 = scmp.ne.s32.totalorder %s68, %s69
      %p83 = scmp.eq.s32.totalorder %s19, 1
      %p84 = por %p82, %p83
      %p86 = scmp.ne.s32.totalorder %s69, %s85
      %p87 = scmp.eq.s32.totalorder %s19, 0
      %p88 = por %p86, %p87
      %s90 = sadd.s32 %s89, 1
      %p93 = scmp.eq.s32.totalorder %s13, 1
      %p94 = scmp.ne.s32.totalorder %s89, %s91
      %p95 = scmp.eq.s32.totalorder %s13, 0
      %p96 = por %p94, %p95
      %p97 = scmp.ne.s32.totalorder %s89, %s91
      %p98 = scmp.eq.s32.totalorder %s18, 1
      %p99 = por %p97, %p98
      %p100 = scmp.ne.s32.totalorder %s91, %s92
      %p101 = scmp.eq.s32.totalorder %s18, 0
      %p102 = por %p100, %p101
      %p103 = scmp.ne.s32.totalorder %s91, %s92
      %p104 = scmp.eq.s32.totalorder %s19, 1
      %p105 = por %p103, %p104
      %p107 = scmp.ne.s32.totalorder %s92, %s106
      %p108 = scmp.eq.s32.totalorder %s19, 0
      %p109 = por %p107, %p108
      %s111 = sadd.s32 %s110, 1
      %p114 = scmp.eq.s32.totalorder %s13, 1
      %p115 = scmp.ne.s32.totalorder %s110, %s112
      %p116 = scmp.eq.s32.totalorder %s13, 0
      %p117 = por %p115, %p116
      %p118 = scmp.ne.s32.totalorder %s110, %s112
      %p119 = scmp.eq.s32.totalorder %s18, 1
      %p120 = por %p118, %p119
      %p121 = scmp.ne.s32.totalorder %s112, %s113
      %p122 = scmp.eq.s32.totalorder %s18, 0
      %p123 = por %p121, %p122
      %p124 = scmp.ne.s32.totalorder %s112, %s113
      %p125 = scmp.eq.s32.totalorder %s19, 1
      %p126 = por %p124, %p125
      %p128 = scmp.ne.s32.totalorder %s113, %s127
      %p129 = scmp.eq.s32.totalorder %s19, 0
      %p130 = por %p128, %p129
      %s131 = ssub.s32 %s20, %s32
      %s132 = ssub.s32 %s21, %s28
      %s133 = sor.u32 %s131, %s132
      %p134 = scmp.eq.s32.totalorder %s133, 0
      %s136 = sadd.s32 %s135, 1
      %s137 = scalar_select %p134, %s135, %s136
      %p140 = pneg %p134
      %p141 = scmp.eq.s32.totalorder %s13, 1
      %p142 = por %p140, %p141
      %p143 = scmp.ne.s32.totalorder %s135, %s138
      %p144 = scmp.eq.s32.totalorder %s13, 0
      %p145 = por %p143, %p144
      %p146 = scmp.ne.s32.totalorder %s135, %s138
      %p147 = scmp.eq.s32.totalorder %s18, 1
      %p148 = por %p146, %p147
      %p149 = scmp.ne.s32.totalorder %s138, %s139
      %p150 = scmp.eq.s32.totalorder %s18, 0
      %p151 = por %p149, %p150
      %p152 = scmp.ne.s32.totalorder %s138, %s139
      %p153 = scmp.eq.s32.totalorder %s19, 1
      %p154 = por %p152, %p153
      %p156 = scmp.ne.s32.totalorder %s139, %s155
      %p157 = scmp.eq.s32.totalorder %s19, 0
      %p158 = por %p156, %p157
      %p159 = scmp.le.s32.totalorder 1, %s13
      %p160 = scmp.lt.s32.totalorder %s13, 3
      %p161 = pnand %p159, %p160
      %p162 = pneg %p161
      // Predicated region
      $region9: #{tpu_custom_call.1} parent=5 // pred_check
        _
      $region10: #{tpu_custom_call.1} parent=5 // pred_check_branch
        %164 = sbr.rel (%p161) target = $region12
      $region11: #{tpu_custom_call.1} parent=5 // pred_region
        %s165 = ssub.s32 %s13, 1
        // Predicated region
        $region13: #{tpu_custom_call.1} parent=11 // pred_check
          %p166 = pneg %p102
        $region14: #{tpu_custom_call.1} parent=11 // pred_check_branch
          %168 = sbr.rel (%p166) target = $region16
        $region15: #{tpu_custom_call.1} parent=11 // pred_region
          _
        $region16: #{tpu_custom_call.1} parent=11 // pred_fallthru
          _
        // Predicated region
        $region17: #{tpu_custom_call.1} parent=11 // pred_check
          %p169 = pneg %p123
        $region18: #{tpu_custom_call.1} parent=11 // pred_check_branch
          %171 = sbr.rel (%p169) target = $region20
        $region19: #{tpu_custom_call.1} parent=11 // pred_region
          _
        $region20: #{tpu_custom_call.1} parent=11 // pred_fallthru
          _
      $region12: #{tpu_custom_call.1} parent=5 // pred_fallthru
        _
      %p172 = scmp.lt.s32.totalorder %s13, 2
      // Predicated region
      $region21: #{tpu_custom_call.1} parent=5 // pred_check
        %p173 = pneg %p172
      $region22: #{tpu_custom_call.1} parent=5 // pred_check_branch
        %175 = sbr.rel (%p173) target = $region24
      $region23: #{tpu_custom_call.1} parent=5 // pred_region
        // Predicated region
        $region25: #{tpu_custom_call.1} parent=23 // pred_check
          %p176 = pneg %p47
        $region26: #{tpu_custom_call.1} parent=23 // pred_check_branch
          %178 = sbr.rel (%p176) target = $region28
        $region27: #{tpu_custom_call.1} parent=23 // pred_region
          %p179 = scmp.lt.s32.totalorder %s20, 1
          %s180 = scalar_select %p179, %s20, 1
          %p181 = scmp.lt.s32.totalorder %s21, 0
          %s182 = scalar_select %p181, %s21, 0
          %s183 = sadd.s32 %s182, %s180
          %s184 = smul.addr %s183, 8
          %s185 = scalar_lea.vmem %s0, %s184
        $region28: #{tpu_custom_call.1} parent=23 // pred_fallthru
          _
        // Predicated region
        $region29: #{tpu_custom_call.1} parent=23 // pred_check
          %p186 = pneg %p75
        $region30: #{tpu_custom_call.1} parent=23 // pred_check_branch
          %188 = sbr.rel (%p186) target = $region32
        $region31: #{tpu_custom_call.1} parent=23 // pred_region
          %p189 = scmp.lt.s32.totalorder %s20, 1
          %s190 = scalar_select %p189, %s20, 1
          %p191 = scmp.lt.s32.totalorder %s21, 0
          %s192 = scalar_select %p191, %s21, 0
          %s193 = sadd.s32 %s192, %s190
          %s194 = smul.addr %s193, 8
          %s195 = scalar_lea.vmem %s1, %s194
        $region32: #{tpu_custom_call.1} parent=23 // pred_fallthru
          _
      $region24: #{tpu_custom_call.1} parent=5 // pred_fallthru
        _
      %p196 = scmp.le.s32.totalorder 1, %s13
      %p197 = scmp.lt.s32.totalorder %s13, 3
      %p198 = pnand %p196, %p197
      %p199 = pneg %p198
      // Predicated region
      $region33: #{tpu_custom_call.1} parent=5 // pred_check
        _
      $region34: #{tpu_custom_call.1} parent=5 // pred_check_branch
        %201 = sbr.rel (%p198) target = $region36
      $region35: #{tpu_custom_call.1} parent=5 // pred_region
        %s202 = ssub.s32 %s13, 1
        %p203 = scmp.lt.s32.totalorder %s22, 1
        %s204 = scalar_select %p203, %s22, 1
        %p205 = scmp.lt.s32.totalorder %s23, 0
        %s206 = scalar_select %p205, %s23, 0
        %s207 = sadd.s32 %s206, %s204
        %s208 = smul.addr %s207, 8
        %s209 = scalar_lea.vmem %s0, %s208
        %p210 = pneg %p53
        %p211 = pneg %p50
        %p212 = scmp.lt.s32.totalorder %s22, 1
        %s213 = scalar_select %p212, %s22, 1
        %p214 = scmp.lt.s32.totalorder %s23, 0
        %s215 = scalar_select %p214, %s23, 0
        %s216 = sadd.s32 %s215, %s213
        %s217 = smul.addr %s216, 8
        %s218 = scalar_lea.vmem %s1, %s217
        %p219 = pneg %p81
        %p220 = pneg %p78
        %p221 = pneg %p102
        %p222 = pneg %p99
        %p223 = pneg %p123
        %p224 = pneg %p120
        %p225 = pneg %p151
        %p226 = pneg %p148
        %s227 = sand.u32 %s138, 1
        %s228 = scalar_lea.sflag [#allocation3], %s227
        %s229 = sand.u32 %s138, 1
        %s230 = smul.addr %s229, 4
        %s231 = scalar_lea.vmem [#allocation2], %s230
        %p232 = scmp.lt.s32.totalorder %s22, 1
        %s233 = scalar_select %p232, %s22, 1
        %p234 = scmp.lt.s32.totalorder %s23, 0
        %s235 = scalar_select %p234, %s23, 0
        %s236 = sadd.s32 %s235, %s233
        %s237 = smul.addr %s236, 8
        %s238 = scalar_lea.vmem %s0, %s237
        %p239 = scmp.lt.s32.totalorder %s22, 1
        %s240 = scalar_select %p239, %s22, 1
        %p241 = scmp.lt.s32.totalorder %s23, 0
        %s242 = scalar_select %p241, %s23, 0
        %s243 = sadd.s32 %s242, %s240
        %s244 = smul.addr %s243, 8
        %s245 = scalar_lea.vmem %s1, %s244
        %v246 = vld [vmem:[%s238] sm:$0xff]
        %v247 = vld [vmem:[%s2] sm:$0xff]
        %v248 = vld [vmem:[%s2 + $0x8] sm:$0xff]
        %v249 = vld [vmem:[%s2 + $0x10] sm:$0xff]
        %v250 = vld [vmem:[%s2 + $0x18] sm:$0xff]
        %vm251 = vcmask 64512
        %v253 = vsel %vm251, %v247, 0
        %v256 = vsel %vm251, %v248, 0
        %v259 = vsel %vm251, %v249, 0
        %v262 = vsel %vm251, %v250, 0
        %264 = vmatprep.subr.mxu0 0.0
        %265 = vmatpush1.msra.mxu0 %v246
        %266 = vmatprep.subr.mxu0 0.0
        %267 = vmatpush1.msra.mxu0 0.0
        %268 = vmatprep.subr.mxu0 0.0
        %269 = vmatpush1.msra.mxu0 0.0
        %270 = vmatprep.subr.mxu0 0.0
        %271 = vmatpush1.msra.mxu0 0.0
        %272 = vmatprep.subr.mxu0 0.0
        %273 = vmatpush1.msra.mxu0 0.0
        %274 = vmatprep.subr.mxu0 0.0
        %275 = vmatpush1.msra.mxu0 0.0
        %276 = vmatprep.subr.mxu0 0.0
        %277 = vmatpush1.msra.mxu0 0.0
        %278 = vmatprep.subr.mxu0 0.0
        %279 = vmatpush1.msra.mxu0 0.0
        %280 = vmatprep.subr.mxu0 0.0
        %281 = vmatpush1.msra.mxu0 0.0
        %282 = vmatprep.subr.mxu0 0.0
        %283 = vmatpush1.msra.mxu0 0.0
        %284 = vmatprep.subr.mxu0 0.0
        %285 = vmatpush1.msra.mxu0 0.0
        %286 = vmatprep.subr.mxu0 0.0
        %287 = vmatpush1.msra.mxu0 0.0
        %288 = vmatprep.subr.mxu0 0.0
        %289 = vmatpush1.msra.mxu0 0.0
        %290 = vmatprep.subr.mxu0 0.0
        %291 = vmatpush1.msra.mxu0 0.0
        %292 = vmatprep.subr.mxu0 0.0
        %293 = vmatpush1.msra.mxu0 0.0
        %294 = vmatprep.subr.mxu0 0.0
        %295 = vmatpush1.msra.mxu0 0.0
        %296 = vmatprep.subr.mxu0 0.0
        %297 = vmatpush1.msra.mxu0 0.0
        %298 = vmatprep.subr.mxu0 0.0
        %299 = vmatpush1.msra.mxu0 0.0
        %300 = vmatprep.subr.mxu0 0.0
        %301 = vmatpush1.msra.mxu0 0.0
        %302 = vmatprep.subr.mxu0 0.0
        %303 = vmatpush1.msra.mxu0 0.0
        %304 = vmatprep.subr.mxu0 0.0
        %305 = vmatpush1.msra.mxu0 0.0
        %306 = vmatprep.subr.mxu0 0.0
        %307 = vmatpush1.msra.mxu0 0.0
        %308 = vmatprep.subr.mxu0 0.0
        %309 = vmatpush1.msra.mxu0 0.0
        %310 = vmatprep.subr.mxu0 0.0
        %311 = vmatpush1.msra.mxu0 0.0
        %312 = vmatprep.subr.mxu0 0.0
        %313 = vmatpush1.msra.mxu0 0.0
        %314 = vmatprep.subr.mxu0 0.0
        %315 = vmatpush1.msra.mxu0 0.0
        %316 = vmatprep.subr.mxu0 0.0
        %317 = vmatpush1.msra.mxu0 0.0
        %318 = vmatprep.subr.mxu0 0.0
        %319 = vmatpush1.msra.mxu0 0.0
        %320 = vmatprep.subr.mxu0 0.0
        %321 = vmatpush1.msra.mxu0 0.0
        %322 = vmatprep.subr.mxu0 0.0
        %323 = vmatpush1.msra.mxu0 0.0
        %324 = vmatprep.subr.mxu0 0.0
        %325 = vmatpush1.msra.mxu0 0.0
        %326 = vmatprep.subr.mxu0 0.0
        %327 = vmatpush1.msra.mxu0 0.0
        %328 = vmatprep.mubr.f32.mxu0 0.0
        %329 = vmatmul.mubr.f32.gmra.mrb[0].mxu0 %v253
        %v330 = vpop.f32.mrb[0].mxu0
        %v331 = vadd.f32 0.0, %v330
        %v332 = vpop.f32.mrb[0].mxu0
        %333 = vmatprep.mubr.f32.mxu0 0.0
        %334 = vmatmul.mubr.f32.gmra.mrb[0].mxu0 %v256
        %v335 = vpop.f32.mrb[0].mxu0
        %v336 = vadd.f32 0.0, %v335
        %v337 = vpop.f32.mrb[0].mxu0
        %338 = vmatprep.mubr.f32.mxu0 0.0
        %339 = vmatmul.mubr.f32.gmra.mrb[0].mxu0 %v259
        %v340 = vpop.f32.mrb[0].mxu0
        %v341 = vadd.f32 0.0, %v340
        %v342 = vpop.f32.mrb[0].mxu0
        %343 = vmatprep.mubr.f32.mxu0 0.0
        %344 = vmatmul.mubr.f32.gmra.mrb[0].mxu0 %v262
        %v345 = vpop.f32.mrb[0].mxu0
        %v346 = vadd.f32 0.0, %v345
        %v347 = vpop.f32.mrb[0].mxu0
        %348 = vdwg.mxu0
        %v349 = vlaneseq
        %v350 = vshrl.u32 %v349, 7
        %v351 = vadd.s32 %v350, 8
        %v352 = vlaneseq
        %v353 = vand.u32 %v352, 127
        %v354 = vmul.u32 %v350, 2
        %v355 = vmul.u32 %v351, 2
        %v356 = vadd.s32 %v354, 2
        %v357 = vadd.s32 %v355, 2
        %vm358 = vcmp.eq.s32.totalorder %v353, %v356
        %vm359 = vcmp.eq.s32.totalorder %v353, %v357
        %v360 = vsel %vm358, 1, 0
        %v361 = vsel %vm359, 1, 0
        %v362 = vcvt.s32.f32 %v360
        %v363 = vcvt.s32.f32 %v361
        %vm364 = vcmp.eq.s32.totalorder %v353, %v354
        %vm365 = vcmp.eq.s32.totalorder %v353, %v355
        %v366 = vsel %vm364, 1, 0
        %v367 = vsel %vm365, 1, 0
        %v368 = vcvt.s32.f32 %v366
        %v369 = vcvt.s32.f32 %v367
        %v370 = vadd.s32 %v354, 1
        %v371 = vadd.s32 %v355, 1
        %vm372 = vcmp.eq.s32.totalorder %v353, %v370
        %vm373 = vcmp.eq.s32.totalorder %v353, %v371
        %v374 = vsel %vm372, 1, 0
        %v375 = vsel %vm373, 1, 0
        %v376 = vcvt.s32.f32 %v374
        %v377 = vcvt.s32.f32 %v375
        %v378 = vsub.s32 %v354, 1
        %v379 = vsub.s32 %v355, 1
        %vm380 = vcmp.eq.s32.totalorder %v353, %v378
        %vm381 = vcmp.eq.s32.totalorder %v353, %v379
        %v382 = vsel %vm380, 1, 0
        %v383 = vsel %vm381, 1, 0
        %v384 = vcvt.s32.f32 %v382
        %v385 = vcvt.s32.f32 %v383
        %vm386 = vcmask 130048
        %v388 = vsel %vm386, %v336, 0
        %390 = vmatprep.subr.mxu0 0.0
        %391 = vmatpush1.msra.mxu0 %v368
        %392 = vmatprep.subr.mxu0 0.0
        %393 = vmatpush1.msra.mxu0 %v369
        %394 = vmatprep.subr.mxu0 0.0
        %395 = vmatpush1.msra.mxu0 0.0
        %396 = vmatprep.subr.mxu0 0.0
        %397 = vmatpush1.msra.mxu0 0.0
        %398 = vmatprep.subr.mxu0 0.0
        %399 = vmatpush1.msra.mxu0 0.0
        %400 = vmatprep.subr.mxu0 0.0
        %401 = vmatpush1.msra.mxu0 0.0
        %402 = vmatprep.subr.mxu0 0.0
        %403 = vmatpush1.msra.mxu0 0.0
        %404 = vmatprep.subr.mxu0 0.0
        %405 = vmatpush1.msra.mxu0 0.0
        %406 = vmatprep.subr.mxu0 0.0
        %407 = vmatpush1.msra.mxu0 0.0
        %408 = vmatprep.subr.mxu0 0.0
        %409 = vmatpush1.msra.mxu0 0.0
        %410 = vmatprep.subr.mxu0 0.0
        %411 = vmatpush1.msra.mxu0 0.0
        %412 = vmatprep.subr.mxu0 0.0
        %413 = vmatpush1.msra.mxu0 0.0
        %414 = vmatprep.subr.mxu0 0.0
        %415 = vmatpush1.msra.mxu0 0.0
        %416 = vmatprep.subr.mxu0 0.0
        %417 = vmatpush1.msra.mxu0 0.0
        %418 = vmatprep.subr.mxu0 0.0
        %419 = vmatpush1.msra.mxu0 0.0
        %420 = vmatprep.subr.mxu0 0.0
        %421 = vmatpush1.msra.mxu0 0.0
        %422 = vmatprep.subr.mxu0 0.0
        %423 = vmatpush1.msra.mxu0 0.0
        %424 = vmatprep.subr.mxu0 0.0
        %425 = vmatpush1.msra.mxu0 0.0
        %426 = vmatprep.subr.mxu0 0.0
        %427 = vmatpush1.msra.mxu0 0.0
        %428 = vmatprep.subr.mxu0 0.0
        %429 = vmatpush1.msra.mxu0 0.0
        %430 = vmatprep.subr.mxu0 0.0
        %431 = vmatpush1.msra.mxu0 0.0
        %432 = vmatprep.subr.mxu0 0.0
        %433 = vmatpush1.msra.mxu0 0.0
        %434 = vmatprep.subr.mxu0 0.0
        %435 = vmatpush1.msra.mxu0 0.0
        %436 = vmatprep.subr.mxu0 0.0
        %437 = vmatpush1.msra.mxu0 0.0
        %438 = vmatprep.subr.mxu0 0.0
        %439 = vmatpush1.msra.mxu0 0.0
        %440 = vmatprep.subr.mxu0 0.0
        %441 = vmatpush1.msra.mxu0 0.0
        %442 = vmatprep.subr.mxu0 0.0
        %443 = vmatpush1.msra.mxu0 0.0
        %444 = vmatprep.subr.mxu0 0.0
        %445 = vmatpush1.msra.mxu0 0.0
        %446 = vmatprep.subr.mxu0 0.0
        %447 = vmatpush1.msra.mxu0 0.0
        %448 = vmatprep.subr.mxu0 0.0
        %449 = vmatpush1.msra.mxu0 0.0
        %450 = vmatprep.subr.mxu0 0.0
        %451 = vmatpush1.msra.mxu0 0.0
        %452 = vmatprep.subr.mxu0 0.0
        %453 = vmatpush1.msra.mxu0 0.0
        %454 = vmatprep.mubr.f32.mxu0 0.0
        %455 = vmatmul.mubr.f32.gmra.mrb[0].mxu0 %v388
        %v456 = vpop.f32.mrb[0].mxu0
        %v457 = vadd.f32 0.0, %v456
        %v458 = vpop.f32.mrb[0].mxu0
        %459 = vdwg.mxu0
        %v461 = vsel %vm386, %v331, 0
        %463 = vmatprep.subr.mxu0 0.0
        %464 = vmatpush1.msra.mxu0 %v362
        %465 = vmatprep.subr.mxu0 0.0
        %466 = vmatpush1.msra.mxu0 %v363
        %467 = vmatprep.subr.mxu0 0.0
        %468 = vmatpush1.msra.mxu0 0.0
        %469 = vmatprep.subr.mxu0 0.0
        %470 = vmatpush1.msra.mxu0 0.0
        %471 = vmatprep.subr.mxu0 0.0
        %472 = vmatpush1.msra.mxu0 0.0
        %473 = vmatprep.subr.mxu0 0.0
        %474 = vmatpush1.msra.mxu0 0.0
        %475 = vmatprep.subr.mxu0 0.0
        %476 = vmatpush1.msra.mxu0 0.0
        %477 = vmatprep.subr.mxu0 0.0
        %478 = vmatpush1.msra.mxu0 0.0
        %479 = vmatprep.subr.mxu0 0.0
        %480 = vmatpush1.msra.mxu0 0.0
        %481 = vmatprep.subr.mxu0 0.0
        %482 = vmatpush1.msra.mxu0 0.0
        %483 = vmatprep.subr.mxu0 0.0
        %484 = vmatpush1.msra.mxu0 0.0
        %485 = vmatprep.subr.mxu0 0.0
        %486 = vmatpush1.msra.mxu0 0.0
        %487 = vmatprep.subr.mxu0 0.0
        %488 = vmatpush1.msra.mxu0 0.0
        %489 = vmatprep.subr.mxu0 0.0
        %490 = vmatpush1.msra.mxu0 0.0
        %491 = vmatprep.subr.mxu0 0.0
        %492 = vmatpush1.msra.mxu0 0.0
        %493 = vmatprep.subr.mxu0 0.0
        %494 = vmatpush1.msra.mxu0 0.0
        %495 = vmatprep.subr.mxu0 0.0
        %496 = vmatpush1.msra.mxu0 0.0
        %497 = vmatprep.subr.mxu0 0.0
        %498 = vmatpush1.msra.mxu0 0.0
        %499 = vmatprep.subr.mxu0 0.0
        %500 = vmatpush1.msra.mxu0 0.0
        %501 = vmatprep.subr.mxu0 0.0
        %502 = vmatpush1.msra.mxu0 0.0
        %503 = vmatprep.subr.mxu0 0.0
        %504 = vmatpush1.msra.mxu0 0.0
        %505 = vmatprep.subr.mxu0 0.0
        %506 = vmatpush1.msra.mxu0 0.0
        %507 = vmatprep.subr.mxu0 0.0
        %508 = vmatpush1.msra.mxu0 0.0
        %509 = vmatprep.subr.mxu0 0.0
        %510 = vmatpush1.msra.mxu0 0.0
        %511 = vmatprep.subr.mxu0 0.0
        %512 = vmatpush1.msra.mxu0 0.0
        %513 = vmatprep.subr.mxu0 0.0
        %514 = vmatpush1.msra.mxu0 0.0
        %515 = vmatprep.subr.mxu0 0.0
        %516 = vmatpush1.msra.mxu0 0.0
        %517 = vmatprep.subr.mxu0 0.0
        %518 = vmatpush1.msra.mxu0 0.0
        %519 = vmatprep.subr.mxu0 0.0
        %520 = vmatpush1.msra.mxu0 0.0
        %521 = vmatprep.subr.mxu0 0.0
        %522 = vmatpush1.msra.mxu0 0.0
        %523 = vmatprep.subr.mxu0 0.0
        %524 = vmatpush1.msra.mxu0 0.0
        %525 = vmatprep.subr.mxu0 0.0
        %526 = vmatpush1.msra.mxu0 0.0
        %527 = vmatprep.mubr.f32.mxu0 0.0
        %528 = vmatmul.mubr.f32.gmra.mrb[0].mxu0 %v461
        %v529 = vpop.f32.mrb[0].mxu0
        %v530 = vadd.f32 %v457, %v529
        %v531 = vpop.f32.mrb[0].mxu0
        %532 = vdwg.mxu0
        %v534 = vsel %vm386, %v341, 0
        %536 = vmatprep.subr.mxu0 0.0
        %537 = vmatpush1.msra.mxu0 %v376
        %538 = vmatprep.subr.mxu0 0.0
        %539 = vmatpush1.msra.mxu0 %v377
        %540 = vmatprep.subr.mxu0 0.0
        %541 = vmatpush1.msra.mxu0 0.0
        %542 = vmatprep.subr.mxu0 0.0
        %543 = vmatpush1.msra.mxu0 0.0
        %544 = vmatprep.subr.mxu0 0.0
        %545 = vmatpush1.msra.mxu0 0.0
        %546 = vmatprep.subr.mxu0 0.0
        %547 = vmatpush1.msra.mxu0 0.0
        %548 = vmatprep.subr.mxu0 0.0
        %549 = vmatpush1.msra.mxu0 0.0
        %550 = vmatprep.subr.mxu0 0.0
        %551 = vmatpush1.msra.mxu0 0.0
        %552 = vmatprep.subr.mxu0 0.0
        %553 = vmatpush1.msra.mxu0 0.0
        %554 = vmatprep.subr.mxu0 0.0
        %555 = vmatpush1.msra.mxu0 0.0
        %556 = vmatprep.subr.mxu0 0.0
        %557 = vmatpush1.msra.mxu0 0.0
        %558 = vmatprep.subr.mxu0 0.0
        %559 = vmatpush1.msra.mxu0 0.0
        %560 = vmatprep.subr.mxu0 0.0
        %561 = vmatpush1.msra.mxu0 0.0
        %562 = vmatprep.subr.mxu0 0.0
        %563 = vmatpush1.msra.mxu0 0.0
        %564 = vmatprep.subr.mxu0 0.0
        %565 = vmatpush1.msra.mxu0 0.0
        %566 = vmatprep.subr.mxu0 0.0
        %567 = vmatpush1.msra.mxu0 0.0
        %568 = vmatprep.subr.mxu0 0.0
        %569 = vmatpush1.msra.mxu0 0.0
        %570 = vmatprep.subr.mxu0 0.0
        %571 = vmatpush1.msra.mxu0 0.0
        %572 = vmatprep.subr.mxu0 0.0
        %573 = vmatpush1.msra.mxu0 0.0
        %574 = vmatprep.subr.mxu0 0.0
        %575 = vmatpush1.msra.mxu0 0.0
        %576 = vmatprep.subr.mxu0 0.0
        %577 = vmatpush1.msra.mxu0 0.0
        %578 = vmatprep.subr.mxu0 0.0
        %579 = vmatpush1.msra.mxu0 0.0
        %580 = vmatprep.subr.mxu0 0.0
        %581 = vmatpush1.msra.mxu0 0.0
        %582 = vmatprep.subr.mxu0 0.0
        %583 = vmatpush1.msra.mxu0 0.0
        %584 = vmatprep.subr.mxu0 0.0
        %585 = vmatpush1.msra.mxu0 0.0
        %586 = vmatprep.subr.mxu0 0.0
        %587 = vmatpush1.msra.mxu0 0.0
        %588 = vmatprep.subr.mxu0 0.0
        %589 = vmatpush1.msra.mxu0 0.0
        %590 = vmatprep.subr.mxu0 0.0
        %591 = vmatpush1.msra.mxu0 0.0
        %592 = vmatprep.subr.mxu0 0.0
        %593 = vmatpush1.msra.mxu0 0.0
        %594 = vmatprep.subr.mxu0 0.0
        %595 = vmatpush1.msra.mxu0 0.0
        %596 = vmatprep.subr.mxu0 0.0
        %597 = vmatpush1.msra.mxu0 0.0
        %598 = vmatprep.subr.mxu0 0.0
        %599 = vmatpush1.msra.mxu0 0.0
        %600 = vmatprep.mubr.f32.mxu0 0.0
        %601 = vmatmul.mubr.f32.gmra.mrb[0].mxu0 %v534
        %v602 = vpop.f32.mrb[0].mxu0
        %v603 = vadd.f32 0.0, %v602
        %v604 = vpop.f32.mrb[0].mxu0
        %605 = vdwg.mxu0
        %v606 = vadd.f32 %v530, %v603
        %v608 = vsel %vm386, %v346, 0
        %610 = vmatprep.subr.mxu0 0.0
        %611 = vmatpush1.msra.mxu0 %v384
        %612 = vmatprep.subr.mxu0 0.0
        %613 = vmatpush1.msra.mxu0 %v385
        %614 = vmatprep.subr.mxu0 0.0
        %615 = vmatpush1.msra.mxu0 0.0
        %616 = vmatprep.subr.mxu0 0.0
        %617 = vmatpush1.msra.mxu0 0.0
        %618 = vmatprep.subr.mxu0 0.0
        %619 = vmatpush1.msra.mxu0 0.0
        %620 = vmatprep.subr.mxu0 0.0
        %621 = vmatpush1.msra.mxu0 0.0
        %622 = vmatprep.subr.mxu0 0.0
        %623 = vmatpush1.msra.mxu0 0.0
        %624 = vmatprep.subr.mxu0 0.0
        %625 = vmatpush1.msra.mxu0 0.0
        %626 = vmatprep.subr.mxu0 0.0
        %627 = vmatpush1.msra.mxu0 0.0
        %628 = vmatprep.subr.mxu0 0.0
        %629 = vmatpush1.msra.mxu0 0.0
        %630 = vmatprep.subr.mxu0 0.0
        %631 = vmatpush1.msra.mxu0 0.0
        %632 = vmatprep.subr.mxu0 0.0
        %633 = vmatpush1.msra.mxu0 0.0
        %634 = vmatprep.subr.mxu0 0.0
        %635 = vmatpush1.msra.mxu0 0.0
        %636 = vmatprep.subr.mxu0 0.0
        %637 = vmatpush1.msra.mxu0 0.0
        %638 = vmatprep.subr.mxu0 0.0
        %639 = vmatpush1.msra.mxu0 0.0
        %640 = vmatprep.subr.mxu0 0.0
        %641 = vmatpush1.msra.mxu0 0.0
        %642 = vmatprep.subr.mxu0 0.0
        %643 = vmatpush1.msra.mxu0 0.0
        %644 = vmatprep.subr.mxu0 0.0
        %645 = vmatpush1.msra.mxu0 0.0
        %646 = vmatprep.subr.mxu0 0.0
        %647 = vmatpush1.msra.mxu0 0.0
        %648 = vmatprep.subr.mxu0 0.0
        %649 = vmatpush1.msra.mxu0 0.0
        %650 = vmatprep.subr.mxu0 0.0
        %651 = vmatpush1.msra.mxu0 0.0
        %652 = vmatprep.subr.mxu0 0.0
        %653 = vmatpush1.msra.mxu0 0.0
        %654 = vmatprep.subr.mxu0 0.0
        %655 = vmatpush1.msra.mxu0 0.0
        %656 = vmatprep.subr.mxu0 0.0
        %657 = vmatpush1.msra.mxu0 0.0
        %658 = vmatprep.subr.mxu0 0.0
        %659 = vmatpush1.msra.mxu0 0.0
        %660 = vmatprep.subr.mxu0 0.0
        %661 = vmatpush1.msra.mxu0 0.0
        %662 = vmatprep.subr.mxu0 0.0
        %663 = vmatpush1.msra.mxu0 0.0
        %664 = vmatprep.subr.mxu0 0.0
        %665 = vmatpush1.msra.mxu0 0.0
        %666 = vmatprep.subr.mxu0 0.0
        %667 = vmatpush1.msra.mxu0 0.0
        %668 = vmatprep.subr.mxu0 0.0
        %669 = vmatpush1.msra.mxu0 0.0
        %670 = vmatprep.subr.mxu0 0.0
        %671 = vmatpush1.msra.mxu0 0.0
        %672 = vmatprep.subr.mxu0 0.0
        %673 = vmatpush1.msra.mxu0 0.0
        %674 = vmatprep.mubr.f32.mxu0 0.0
        %675 = vmatmul.mubr.f32.gmra.mrb[0].mxu0 %v608
        %v676 = vpop.f32.mrb[0].mxu0
        %v677 = vadd.f32 0.0, %v676
        %v678 = vpop.f32.mrb[0].mxu0
        %679 = vdwg.mxu0
        %v680 = vadd.f32 %v606, %v677
        %v681 = vld [vmem:[%s245] sm:$0xff]
        %682 = vmatprep.subr.mxu0 0.0
        %683 = vmatpush1.msra.mxu0 %v681
        %684 = vmatprep.subr.mxu0 0.0
        %685 = vmatpush1.msra.mxu0 0.0
        %686 = vmatprep.subr.mxu0 0.0
        %687 = vmatpush1.msra.mxu0 0.0
        %688 = vmatprep.subr.mxu0 0.0
        %689 = vmatpush1.msra.mxu0 0.0
        %690 = vmatprep.subr.mxu0 0.0
        %691 = vmatpush1.msra.mxu0 0.0
        %692 = vmatprep.subr.mxu0 0.0
        %693 = vmatpush1.msra.mxu0 0.0
        %694 = vmatprep.subr.mxu0 0.0
        %695 = vmatpush1.msra.mxu0 0.0
        %696 = vmatprep.subr.mxu0 0.0
        %697 = vmatpush1.msra.mxu0 0.0
        %698 = vmatprep.subr.mxu0 0.0
        %699 = vmatpush1.msra.mxu0 0.0
        %700 = vmatprep.subr.mxu0 0.0
        %701 = vmatpush1.msra.mxu0 0.0
        %702 = vmatprep.subr.mxu0 0.0
        %703 = vmatpush1.msra.mxu0 0.0
        %704 = vmatprep.subr.mxu0 0.0
        %705 = vmatpush1.msra.mxu0 0.0
        %706 = vmatprep.subr.mxu0 0.0
        %707 = vmatpush1.msra.mxu0 0.0
        %708 = vmatprep.subr.mxu0 0.0
        %709 = vmatpush1.msra.mxu0 0.0
        %710 = vmatprep.subr.mxu0 0.0
        %711 = vmatpush1.msra.mxu0 0.0
        %712 = vmatprep.subr.mxu0 0.0
        %713 = vmatpush1.msra.mxu0 0.0
        %714 = vmatprep.subr.mxu0 0.0
        %715 = vmatpush1.msra.mxu0 0.0
        %716 = vmatprep.subr.mxu0 0.0
        %717 = vmatpush1.msra.mxu0 0.0
        %718 = vmatprep.subr.mxu0 0.0
        %719 = vmatpush1.msra.mxu0 0.0
        %720 = vmatprep.subr.mxu0 0.0
        %721 = vmatpush1.msra.mxu0 0.0
        %722 = vmatprep.subr.mxu0 0.0
        %723 = vmatpush1.msra.mxu0 0.0
        %724 = vmatprep.subr.mxu0 0.0
        %725 = vmatpush1.msra.mxu0 0.0
        %726 = vmatprep.subr.mxu0 0.0
        %727 = vmatpush1.msra.mxu0 0.0
        %728 = vmatprep.subr.mxu0 0.0
        %729 = vmatpush1.msra.mxu0 0.0
        %730 = vmatprep.subr.mxu0 0.0
        %731 = vmatpush1.msra.mxu0 0.0
        %732 = vmatprep.subr.mxu0 0.0
        %733 = vmatpush1.msra.mxu0 0.0
        %734 = vmatprep.subr.mxu0 0.0
        %735 = vmatpush1.msra.mxu0 0.0
        %736 = vmatprep.subr.mxu0 0.0
        %737 = vmatpush1.msra.mxu0 0.0
        %738 = vmatprep.subr.mxu0 0.0
        %739 = vmatpush1.msra.mxu0 0.0
        %740 = vmatprep.subr.mxu0 0.0
        %741 = vmatpush1.msra.mxu0 0.0
        %742 = vmatprep.subr.mxu0 0.0
        %743 = vmatpush1.msra.mxu0 0.0
        %744 = vmatprep.subr.mxu0 0.0
        %745 = vmatpush1.msra.mxu0 0.0
        %746 = vmatprep.mubr.f32.mxu0 0.0
        %747 = vmatmul.mubr.f32.gmra.mrb[0].mxu0 %v253
        %v748 = vpop.f32.mrb[0].mxu0
        %v749 = vadd.f32 0.0, %v748
        %v750 = vpop.f32.mrb[0].mxu0
        %751 = vmatprep.mubr.f32.mxu0 0.0
        %752 = vmatmul.mubr.f32.gmra.mrb[0].mxu0 %v256
        %v753 = vpop.f32.mrb[0].mxu0
        %v754 = vpop.f32.mrb[0].mxu0
        %755 = vmatprep.mubr.f32.mxu0 0.0
        %756 = vmatmul.mubr.f32.gmra.mrb[0].mxu0 %v259
        %v757 = vpop.f32.mrb[0].mxu0
        %v758 = vpop.f32.mrb[0].mxu0
        %759 = vmatprep.mubr.f32.mxu0 0.0
        %760 = vmatmul.mubr.f32.gmra.mrb[0].mxu0 %v262
        %v761 = vpop.f32.mrb[0].mxu0
        %v762 = vadd.f32 0.0, %v761
        %v763 = vpop.f32.mrb[0].mxu0
        %764 = vdwg.mxu0
        %vm765 = vcmp.eq.s32.totalorder %v353, 0
        %767 = vset.pattern.permute.xlu0 0
        %768 = vperm.xlu0 %767, %v749
        %v769 = vpop.permute.xlu0 %768
        %v771 = vsel %vm765, %v769, 0.0
        %v772 = vadd.f32 %v680, %v771
        %vm773 = vcmp.eq.s32.totalorder %v353, 31
        %775 = vset.pattern.permute.xlu0 1
        %776 = vperm.xlu0 %775, %v762
        %v777 = vpop.permute.xlu0 %776
        %v779 = vsel %vm773, %v777, 0.0
        %v780 = vadd.f32 %v772, %v779
        %v781 = vld [vmem:[%s3] sm:$0xff]
        %783 = vset.pattern.permute.xlu0 0
        %784 = vperm.xlu0 %783, %v781
        %v785 = vpop.permute.xlu0 %784
        %v787 = vadd.f32 %v780, %v785
        %vm788 = vcmask 257024
        %789 = vst.msk [vmem:[%s231] sm:$0xf] %vm788, %v787
        %s790 = sand.u32 %s138, 1
        %s791 = scalar_lea.sflag [#allocation3], %s790
        %s792 = sand.u32 %s138, 1
        %s793 = smul.addr %s792, 4
        %s794 = scalar_lea.vmem [#allocation2], %s793
        // Predicated region
        $region37: #{tpu_custom_call.1} parent=35 // pred_check
          %p795 = pneg %p148
        $region38: #{tpu_custom_call.1} parent=35 // pred_check_branch
          %797 = sbr.rel (%p795) target = $region40
        $region39: #{tpu_custom_call.1} parent=35 // pred_region
          %s799 = ssub.s32 64, 64
          %800 = vsyncadd %s791, %s799
          %s801 = sadd.s32 %s23, %s22
          %s802 = smul.addr %s801, 64
          %s803 = scalar_lea.hbm %s4, %s802
          %s805 = sshll.u32 %s794, 4
          %s806 = int_to_ptr.vmem [resolvable:$true] %s805
          %808 = dma.vmem_to_hbm [thread:$0]  %s806, 64, %s803, %s791
        $region40: #{tpu_custom_call.1} parent=35 // pred_fallthru
          _
      $region36: #{tpu_custom_call.1} parent=5 // pred_fallthru
        _
      %p809 = scmp.le.s32.totalorder 2, %s13
      // Predicated region
      $region41: #{tpu_custom_call.1} parent=5 // pred_check
        %p810 = pneg %p809
      $region42: #{tpu_custom_call.1} parent=5 // pred_check_branch
        %812 = sbr.rel (%p810) target = $region44
      $region43: #{tpu_custom_call.1} parent=5 // pred_region
        %s813 = ssub.s32 %s13, 2
        // Predicated region
        $region45: #{tpu_custom_call.1} parent=43 // pred_check
          %p814 = pneg %p154
        $region46: #{tpu_custom_call.1} parent=43 // pred_check_branch
          %816 = sbr.rel (%p814) target = $region48
        $region47: #{tpu_custom_call.1} parent=43 // pred_region
          %s817 = sand.u32 %s139, 1
          %s818 = scalar_lea.sflag [#allocation3], %s817
          %s819 = sand.u32 %s139, 1
          %s820 = smul.addr %s819, 4
          %s821 = scalar_lea.vmem [#allocation2], %s820
          %822 = dma.done %s818, 64
        $region48: #{tpu_custom_call.1} parent=43 // pred_fallthru
          _
      $region44: #{tpu_custom_call.1} parent=5 // pred_fallthru
        _
    $region6: #{tpu_custom_call.1} parent=1 // loop_footer
      %s17 = sadd.s32 1, %s13
    $region7: #{tpu_custom_call.1} parent=1 // loop_footer_branch
      %12 = sbr.rel target = $region3
    $region8: #{tpu_custom_call.1} parent=1 // loop_exit
      _
    %823 = vsyncpa [#allocation3], 1
    %s824 = scalar_lea.sflag [#allocation3], 1
    %825 = vsyncpa %s824, 1

</llo_original>
